<compile_context>
chip_gen: v5e
topology: v5e:2x2
jax: 0.10.0
libtpu: 0.0.40
codegen_flags: <defaults>
</compile_context>

<pallas_src>
import math

import jax
import jax.numpy as jnp
from jax import lax
from jax.experimental import pallas as pl
from jax.experimental.pallas import tpu as pltpu

KS = (3, 5, 7)                 # SK branch kernel sizes (fixed by the module)
SB = 128                       # output-channel superblock width (grouped convs)
VMEM_LIMIT = 32 * 1024 * 1024  # explicit scoped-VMEM allowance (safe on v5e/v6e/v7x)


def _round_up(x, m):
    return (x + m - 1) // m * m


# ----------------------------------------------------------------------------
# Pallas matmul kernels (bf16 MXU inputs, f32 accumulation)
# ----------------------------------------------------------------------------
def _mm_kernel(a_ref, b_ref, o_ref, acc_ref):
    @pl.when(pl.program_id(2) == 0)
    def _():
        acc_ref[...] = jnp.zeros_like(acc_ref)

    acc_ref[...] += jnp.dot(a_ref[...], b_ref[...],
                            preferred_element_type=jnp.float32)

    @pl.when(pl.program_id(2) == pl.num_programs(2) - 1)
    def _():
        o_ref[...] = acc_ref[...].astype(o_ref.dtype)


def _mm_bias_kernel(a_ref, b_ref, bias_ref, o_ref, acc_ref):
    @pl.when(pl.program_id(2) == 0)
    def _():
        acc_ref[...] = jnp.zeros_like(acc_ref)

    acc_ref[...] += jnp.dot(a_ref[...], b_ref[...],
                            preferred_element_type=jnp.float32)

    @pl.when(pl.program_id(2) == pl.num_programs(2) - 1)
    def _():
        o_ref[...] = (acc_ref[...] + bias_ref[...]).astype(o_ref.dtype)


def _pick_tm(M):
    if M >= 256:
        return 256, _round_up(M, 256)
    Mp = _round_up(M, 8)
    return Mp, Mp


def matmul_dense(a, w, n_out, out_dtype=jnp.bfloat16):
    """a: (M, K) float; w: (Kp, Np) bf16 pre-padded (Kp, Np multiples of 256,
    Kp >= K).  Returns (M, n_out) = a @ w[:K, :n_out] in out_dtype."""
    M, K = a.shape
    Kp, Np = w.shape
    assert Kp % 128 == 0 and Np % 128 == 0 and Kp >= K and Np >= n_out

    tm, Mp = _pick_tm(M)
    tn = 256 if Np % 256 == 0 else 128
    # Keep >=2 steps on a parallel axis when possible (v7x: 2 TensorCores).
    # Split N, not M, so weight DMA is not duplicated in the mem-bound regime.
    if Mp // tm == 1 and Np // tn == 1 and Np >= 256:
        tn = Np // 2
    # Single large K step (Kp pre-padded); zero K rows are free when mem-bound.
    tk = Kp if Kp <= 2048 else 2048
    nk = Kp // tk

    a = a.astype(jnp.bfloat16)
    if (Mp, Kp) != (M, K):
        a = jnp.pad(a, ((0, Mp - M), (0, Kp - K)))

    out = pl.pallas_call(
        _mm_kernel,
        out_shape=jax.ShapeDtypeStruct((Mp, Np), out_dtype),
        grid_spec=pltpu.PrefetchScalarGridSpec(
            num_scalar_prefetch=0,
            grid=(Mp // tm, Np // tn, nk),
            in_specs=[
                pl.BlockSpec((tm, tk), lambda i, j, k: (i, k)),
                pl.BlockSpec((tk, tn), lambda i, j, k: (k, j)),
            ],
            out_specs=pl.BlockSpec((tm, tn), lambda i, j, k: (i, j)),
            scratch_shapes=[pltpu.VMEM((tm, tn), jnp.float32)],
        ),
        compiler_params=pltpu.CompilerParams(
            dimension_semantics=("parallel", "parallel", "arbitrary"),
            vmem_limit_bytes=VMEM_LIMIT),
    )(a, w)

    if (Mp, Np) != (M, n_out):
        out = out[:M, :n_out]
    return out


def matmul_grouped(a, w_stacked, bias, C, khw, out_dtype=jnp.bfloat16):
    """Grouped-conv matmul exploiting the block-diagonal structure.
    a: (M, C*khw) im2col patches, channel-slowest feature order.
    w_stacked: (S*sbK, SB) bf16, S = C//SB, sbK = SB*khw; row block j is the
      block-diagonal superblock mapping input channels [SB*j, SB*(j+1)) to
      output channels [SB*j, SB*(j+1)).
    bias: (C,).  Returns (M, C)."""
    M, Kfull = a.shape
    S = C // SB
    sbK = SB * khw
    assert Kfull == S * sbK and w_stacked.shape == (S * sbK, SB)

    tm, Mp = _pick_tm(M)
    a = a.astype(jnp.bfloat16)
    if Mp != M:
        a = jnp.pad(a, ((0, Mp - M), (0, 0)))
    bias_p = bias.astype(jnp.float32).reshape(1, C)

    out = pl.pallas_call(
        _mm_bias_kernel,
        out_shape=jax.ShapeDtypeStruct((Mp, C), out_dtype),
        grid_spec=pltpu.PrefetchScalarGridSpec(
            num_scalar_prefetch=0,
            grid=(Mp // tm, S, 1),
            in_specs=[
                # j-dependent K window: only the SB input channels feeding
                # output superblock j are streamed (contiguous patch rows).
                pl.BlockSpec((tm, sbK), lambda i, j, k: (i, j)),
                pl.BlockSpec((sbK, SB), lambda i, j, k: (j, 0)),
                pl.BlockSpec((1, SB), lambda i, j, k: (0, j)),
            ],
            out_specs=pl.BlockSpec((tm, SB), lambda i, j, k: (i, j)),
            scratch_shapes=[pltpu.VMEM((tm, SB), jnp.float32)],
        ),
        compiler_params=pltpu.CompilerParams(
            dimension_semantics=("parallel", "parallel", "arbitrary"),
            vmem_limit_bytes=VMEM_LIMIT),
    )(a, w_stacked, bias_p)

    if Mp != M:
        out = out[:M]
    return out


# ----------------------------------------------------------------------------
# Convolutions (NHWC) lowered onto the Pallas matmuls
# ----------------------------------------------------------------------------
def conv1x1(x, wm, n_out, out_dtype=jnp.bfloat16):
    """1x1 conv (bias-free in this net): a free reshape + matmul."""
    B, H, W, C = x.shape
    y = matmul_dense(x.reshape(B * H * W, C), wm, n_out, out_dtype=out_dtype)
    return y.reshape(B, H, W, n_out)


def conv_im2col(x, wm, n_out, k, stride, padding, out_dtype=jnp.bfloat16):
    """Dense k x k conv via one fused patch-extraction op + matmul.  Patch
    feature ordering of conv_general_dilated_patches is [cin][kh][kw]
    (channel slowest), matching the weight prep."""
    B = x.shape[0]
    patches = lax.conv_general_dilated_patches(
        x.astype(jnp.bfloat16), (k, k), (stride, stride), padding,
        dimension_numbers=('NHWC', 'HWIO', 'NHWC'))
    _, OH, OW, KK = patches.shape
    y = matmul_dense(patches.reshape(B * OH * OW, KK), wm, n_out,
                     out_dtype=out_dtype)
    return y.reshape(B, OH, OW, n_out)


def grouped_conv_im2col(x, w_stacked, bias, k, stride, padding,
                        out_dtype=jnp.bfloat16):
    """Grouped (groups=32) k x k conv via patches + per-superblock matmul."""
    B, H, W, C = x.shape
    patches = lax.conv_general_dilated_patches(
        x.astype(jnp.bfloat16), (k, k), (stride, stride), padding,
        dimension_numbers=('NHWC', 'HWIO', 'NHWC'))
    _, OH, OW, KK = patches.shape
    y = matmul_grouped(patches.reshape(B * OH * OW, KK), w_stacked, bias,
                       C, k * k, out_dtype=out_dtype)
    return y.reshape(B, OH, OW, C)


def same_padding(size, k, stride):
    """Mirrors conv2d_same_padding: padding computed from H only (the torch
    reference does the same), extra pad on bottom/right when odd."""
    out = (size + stride - 1) // stride
    pad_total = max(0, (out - 1) * stride + k - size)
    p0 = pad_total // 2
    p1 = pad_total - p0
    return ((p0, p1), (p0, p1))


# ----------------------------------------------------------------------------
# Weight preparation (run ONCE, outside the per-forward hot path)
# ----------------------------------------------------------------------------
def prep_conv_w(w):
    """Dense conv weight (OC, Cin, KH, KW) -> (Kp, Np) bf16 matmul weight with
    rows ordered [cin][kh][kw]; K/N padded to multiples of 256 (2048-multiples
    for very large K) so Pallas tiles are 256-aligned for v6e/v7x MXUs."""
    OC = w.shape[0]
    K = w.shape[1] * w.shape[2] * w.shape[3]
    wm = w.reshape(OC, K).T
    Kp = _round_up(K, 256) if K <= 2048 else _round_up(K, 2048)
    Np = _round_up(OC, 256)
    if (Kp, Np) != (K, OC):
        wm = jnp.pad(wm, ((0, Kp - K), (0, Np - OC)))
    return wm.astype(jnp.bfloat16)


def prep_grouped_conv_w(w, groups, sb=SB):
    """Grouped conv weight (C, C/G, KH, KW) -> stacked per-superblock
    block-diagonal matmul weights of shape (S*sb*KH*KW, sb), S = C // sb.
    Superblock j maps input channels [sb*j, sb*(j+1)) (row order [cin][kh][kw])
    to output channels [sb*j, sb*(j+1)).  Only the 128-wide diagonal blocks are
    materialized -> ~6x less weight HBM traffic than a fully dense block-diag."""
    C, Cg, KH, KW = w.shape
    G = groups
    assert C % sb == 0 and sb % Cg == 0 and C // G == Cg
    Kg = Cg * KH * KW
    S = C // sb
    P = sb // Cg                                        # groups per superblock
    wg = w.reshape(G, Cg, Kg).transpose(0, 2, 1)        # (G, Kg, Cg) per group
    wg = wg.reshape(S, P, Kg, Cg)
    eye = jnp.eye(P, dtype=w.dtype)
    wsb = jnp.einsum('spkc,pq->spkqc', wg, eye)         # block-diag in superblock
    return wsb.reshape(S * sb * KH * KW, sb).astype(jnp.bfloat16)


# ----------------------------------------------------------------------------
# Small glue ops (plain JAX; whole-tensor reductions / tiny matmuls)
# ----------------------------------------------------------------------------
def relu(x):
    return jnp.maximum(x, 0.0)


def batchnorm(x, gamma, beta, eps=1e-5):
    # PyTorch nn.BatchNorm2d default (training-mode) forward: batch statistics.
    # TODO(synk): batch-stat BN needs the full conv output first, so conv+BN+ReLU
    # cannot be folded into the matmul epilogue; BN math runs in f32 on the
    # bf16 feature maps emitted by the Pallas matmuls.
    x = x.astype(jnp.float32)
    mean = jnp.mean(x, axis=(0, 1, 2), keepdims=True)
    var = jnp.mean(jnp.square(x - mean), axis=(0, 1, 2), keepdims=True)
    return (x - mean) * lax.rsqrt(var + eps) * gamma + beta


def maxpool_3x3_s2_p1(x):
    return lax.reduce_window(
        x, -jnp.inf, lax.max,
        window_dimensions=(1, 3, 3, 1),
        window_strides=(1, 2, 2, 1),
        padding=((0, 0), (1, 1), (1, 1), (0, 0)),
    )


# ----------------------------------------------------------------------------
# Parameters (deterministic synthetic init — shapes match the torch module,
# stored directly in their prepared matmul form)
# ----------------------------------------------------------------------------
def _uniform(key, shape, fan_in):
    bound = 1.0 / math.sqrt(fan_in)
    return jax.random.uniform(key, shape, jnp.float32, minval=-bound, maxval=bound)


def make_skunit_params(key, in_f, mid_f, out_f, groups=32, r=16, L=32, ks=KS):
    keys = jax.random.split(key, 13)
    d = max(int(mid_f / r), L)
    M = len(ks)
    p = {}
    p["conv1_w"] = prep_conv_w(_uniform(keys[0], (mid_f, in_f, 1, 1), in_f))
    p["bn1"] = (jnp.ones(mid_f, jnp.float32), jnp.zeros(mid_f, jnp.float32))
    sk = []
    for i, k in enumerate(ks):
        fan = mid_f * k * k  # _ConvNd.reset_parameters: n = in_channels * prod(kernel)
        w = _uniform(keys[1 + 2 * i], (mid_f, mid_f // groups, k, k), fan)
        b = _uniform(keys[2 + 2 * i], (mid_f,), fan)
        sk.append((prep_grouped_conv_w(w, groups), b))
    p["sk_convs"] = sk
    p["fc_w"] = _uniform(keys[7], (d, mid_f, 1, 1), mid_f).reshape(d, mid_f).T  # (mid, d)
    p["sparse_w_t"] = _uniform(keys[8], (M * mid_f, d), d).T                    # (d, M*mid)
    p["sparse_b"] = _uniform(keys[9], (M * mid_f,), d)
    p["conv3_w"] = prep_conv_w(_uniform(keys[10], (out_f, mid_f, 1, 1), mid_f))
    p["bn3"] = (jnp.ones(out_f, jnp.float32), jnp.zeros(out_f, jnp.float32))
    if in_f != out_f:
        p["short_w"] = prep_conv_w(_uniform(keys[11], (out_f, in_f, 1, 1), in_f))
        p["short_bn"] = (jnp.ones(out_f, jnp.float32), jnp.zeros(out_f, jnp.float32))
    return p


def build_sknet_params(key, class_num, nums_block_list=(1, 1, 1, 1)):
    kb, k1, k2, k3, k4, kcw, kcb = jax.random.split(key, 7)
    params = {}
    params["basic_w"] = prep_conv_w(_uniform(kb, (64, 3, 7, 7), 3 * 7 * 7))
    params["basic_bn"] = (jnp.ones(64, jnp.float32), jnp.zeros(64, jnp.float32))

    def make_stage(k, in_f, mid_f, out_f, n):
        keys = jax.random.split(k, n)
        blocks = [make_skunit_params(keys[0], in_f, mid_f, out_f)]
        for i in range(1, n):
            blocks.append(make_skunit_params(keys[i], out_f, mid_f, out_f))
        return blocks

    params["stage1"] = make_stage(k1, 64, 128, 256, nums_block_list[0])
    params["stage2"] = make_stage(k2, 256, 256, 512, nums_block_list[1])
    params["stage3"] = make_stage(k3, 512, 512, 1024, nums_block_list[2])
    params["stage4"] = make_stage(k4, 1024, 1024, 2048, nums_block_list[3])
    params["cls_w_t"] = _uniform(kcw, (class_num, 2048), 2048).T   # (2048, class_num)
    params["cls_b"] = _uniform(kcb, (class_num,), 2048)
    return params


# ----------------------------------------------------------------------------
# Forward pass (mirrors SSKConv / SKUnit / SKNet), NHWC internally
# ----------------------------------------------------------------------------
def sskconv_forward(p, x, stride):
    B, H, W, C = x.shape
    feats = []
    for (w_sb, b), k in zip(p["sk_convs"], KS):
        pad = same_padding(H, k, stride)
        feats.append(grouped_conv_im2col(x, w_sb, b, k, stride, pad))
    feats_U = feats[0].astype(jnp.float32)                        # branch sum in f32
    for f in feats[1:]:
        feats_U = feats_U + f.astype(jnp.float32)
    feats_S = jnp.mean(feats_U, axis=(1, 2))                      # gap -> (B, C)
    feats_Z = jnp.dot(feats_S, p["fc_w"])                         # 1x1 fc, no bias (tiny)
    att = jnp.dot(feats_Z, p["sparse_w_t"]) + p["sparse_b"]       # sparse_fc Linear (tiny)
    att = att.reshape(B, len(KS), C)                              # NOTE: no softmax (matches torch)
    out = feats[0] * att[:, 0, :][:, None, None, :]               # bf16 * f32 -> f32 FMA chain
    for i in range(1, len(KS)):
        out = out + feats[i] * att[:, i, :][:, None, None, :]
    return out


def skunit_forward(p, x, stride):
    mid = p["bn1"][0].shape[0]
    out_f = p["bn3"][0].shape[0]
    out = relu(batchnorm(conv1x1(x, p["conv1_w"], mid), *p["bn1"]))
    out = sskconv_forward(p, out, stride)
    out = batchnorm(conv1x1(out, p["conv3_w"], out_f), *p["bn3"])
    if "short_w" in p:
        # (stride-1 blocks could share the A-read between conv1 and shortcut by
        # concatenating their weights along N; skipped — modest win.)
        xs = x[:, ::stride, ::stride, :] if stride != 1 else x    # strided 1x1 conv
        residual = batchnorm(conv1x1(xs, p["short_w"], out_f), *p["short_bn"])
    else:
        residual = x
    return relu(out + residual)


def sknet_forward(params, x_nchw):
    x = jnp.transpose(x_nchw, (0, 2, 3, 1))                       # NCHW -> NHWC once
    n_stem = params["basic_bn"][0].shape[0]
    fea = conv_im2col(x, params["basic_w"], n_stem, 7, 2, ((3, 3), (3, 3)))
    fea = relu(batchnorm(fea, *params["basic_bn"]))
    fea = maxpool_3x3_s2_p1(fea)
    for sname, stride in (("stage1", 1), ("stage2", 2), ("stage3", 2), ("stage4", 2)):
        for bi, bp in enumerate(params[sname]):
            fea = skunit_forward(bp, fea, stride if bi == 0 else 1)
    fea = jnp.mean(fea, axis=(1, 2))                              # gap + squeeze -> (B, 2048)
    return jnp.dot(fea, params["cls_w_t"]) + params["cls_b"]      # tiny classifier: plain dot


# ----------------------------------------------------------------------------
# Numeric self-check: patch ordering + block-diagonal construction vs lax conv
# (both sides use bf16 inputs with f32 accumulation, so tolerances are tight)
# ----------------------------------------------------------------------------
def _self_check(key):
    k1, k2 = jax.random.split(key)
    for (C, k, stride), kk in zip(((128, 3, 1), (256, 5, 2)), jax.random.split(k1, 2)):
        G = 32
        kw_, kb_, kx_ = jax.random.split(kk, 3)
        fan = C * k * k
        w = _uniform(kw_, (C, C // G, k, k), fan)
        b = _uniform(kb_, (C,), fan)
        x = jax.random.normal(kx_, (1, 8, 8, C), jnp.float32)
        pad = same_padding(8, k, stride)
        got = grouped_conv_im2col(x, prep_grouped_conv_w(w, G), b, k, stride, pad,
                                  out_dtype=jnp.float32)
        ref = lax.conv_general_dilated(
            x.astype(jnp.bfloat16),
            jnp.transpose(w, (2, 3, 1, 0)).astype(jnp.bfloat16),
            (stride, stride), pad, dimension_numbers=('NHWC', 'HWIO', 'NHWC'),
            feature_group_count=G, preferred_element_type=jnp.float32) + b
        assert bool(jnp.allclose(got, ref, atol=1e-2, rtol=1e-2)), \
            f"grouped conv mismatch (C={C}, k={k}, stride={stride})"
    kw_, kx_ = jax.random.split(k2)
    w = _uniform(kw_, (64, 3, 7, 7), 3 * 7 * 7)
    x = jax.random.normal(kx_, (1, 8, 8, 3), jnp.float32)
    got = conv_im2col(x, prep_conv_w(w), 64, 7, 2, ((3, 3), (3, 3)),
                      out_dtype=jnp.float32)
    ref = lax.conv_general_dilated(
        x.astype(jnp.bfloat16), jnp.transpose(w, (2, 3, 1, 0)).astype(jnp.bfloat16),
        (2, 2), ((3, 3), (3, 3)), dimension_numbers=('NHWC', 'HWIO', 'NHWC'),
        preferred_element_type=jnp.float32)
    assert bool(jnp.allclose(got, ref, atol=1e-2, rtol=1e-2)), "dense conv mismatch"


# ----------------------------------------------------------------------------
if __name__ == "__main__":
    key = jax.random.PRNGKey(0)
    pkey, xkey, ckey = jax.random.split(key, 3)

    _self_check(ckey)   # validates patch ordering / block-diag weight layout

    class_num = 10
    # small config: one SKUnit per stage (channel widths are fixed by the module)
    params = build_sknet_params(pkey, class_num, nums_block_list=(1, 1, 1, 1))
    x = jax.random.normal(xkey, (2, 3, 32, 32), jnp.float32)

    fwd = jax.jit(sknet_forward)
    out = fwd(params, x)
    jax.block_until_ready(out)
    assert out.shape == (2, class_num), out.shape
    assert bool(jnp.all(jnp.isfinite(out)))
    print("KERNEL_OK")
</pallas_src>

<mosaic_0001>
module attributes {stable_mosaic.version = 11 : i64} {
  func.func @_mm_bias_kernel(%arg0: i32, %arg1: i32, %arg2: i32, %arg3: memref<64x1152xbf16, #tpu.memory_space<vmem>>, %arg4: memref<1152x128xbf16, #tpu.memory_space<vmem>>, %arg5: memref<1x128xf32, #tpu.memory_space<vmem>>, %arg6: memref<64x128xf32, #tpu.memory_space<vmem>>, %arg7: memref<64x128xf32, #tpu.memory_space<vmem>>) attributes {dimension_semantics = [#tpu.dimension_semantics<parallel>, #tpu.dimension_semantics<parallel>, #tpu.dimension_semantics<arbitrary>], iteration_bounds = array<i64: 1, 1, 1>, scalar_prefetch = 0 : i64, scratch_operands = 1 : i64, tpu.core_type = #tpu.core_type<tc>, window_params = [{transform_indices = @transform_0, window_bounds = array<i64: 64, 1152>}, {transform_indices = @transform_1, window_bounds = array<i64: 1152, 128>}, {transform_indices = @transform_2, window_bounds = array<i64: 1, 128>}, {transform_indices = @transform_3, window_bounds = array<i64: 64, 128>}]} {
    %c0_i32 = arith.constant 0 : i32
    %0 = arith.cmpi eq, %arg2, %c0_i32 : i32
    %1 = arith.extui %0 : i1 to i32
    %c0_i32_0 = arith.constant 0 : i32
    %2 = arith.cmpi ne, %1, %c0_i32_0 : i32
    scf.if %2 {
      %cst_10 = arith.constant 0.000000e+00 : f32
      %12 = vector.broadcast %cst_10 : f32 to vector<64x128xf32>
      %c0_11 = arith.constant 0 : index
      %c0_12 = arith.constant 0 : index
      %13 = vector.load %arg7[%c0_11, %c0_12] : memref<64x128xf32, #tpu.memory_space<vmem>>, vector<64x128xf32>
      tpu.vector_store %arg7[%c0_11, %c0_12], %12 {strides = array<i32>} : memref<64x128xf32, #tpu.memory_space<vmem>>, vector<64x128xf32>,
    } else {
    }
    %c0 = arith.constant 0 : index
    %c0_1 = arith.constant 0 : index
    %3 = vector.load %arg7[%c0, %c0_1] : memref<64x128xf32, #tpu.memory_space<vmem>>, vector<64x128xf32>
    %c0_2 = arith.constant 0 : index
    %c0_3 = arith.constant 0 : index
    %4 = vector.load %arg3[%c0_2, %c0_3] : memref<64x1152xbf16, #tpu.memory_space<vmem>>, vector<64x1152xbf16>
    %c0_4 = arith.constant 0 : index
    %c0_5 = arith.constant 0 : index
    %5 = vector.load %arg4[%c0_4, %c0_5] : memref<1152x128xbf16, #tpu.memory_space<vmem>>, vector<1152x128xbf16>
    %cst = arith.constant dense<0.000000e+00> : vector<64x128xf32>
    %6 = tpu.matmul %4, %5, %cst {dimension_numbers = #tpu.dot_dimension_numbers<[1], [0], [0], [1], [0, 0, 1, 1], [], []>} : vector<64x1152xbf16>, vector<1152x128xbf16>, vector<64x128xf32> -> vector<64x128xf32>
    %7 = arith.addf %3, %6 : vector<64x128xf32>
    %c0_6 = arith.constant 0 : index
    %c0_7 = arith.constant 0 : index
    %8 = vector.load %arg7[%c0_6, %c0_7] : memref<64x128xf32, #tpu.memory_space<vmem>>, vector<64x128xf32>
    tpu.vector_store %arg7[%c0_6, %c0_7], %7 {strides = array<i32>} : memref<64x128xf32, #tpu.memory_space<vmem>>, vector<64x128xf32>,
    %c0_i32_8 = arith.constant 0 : i32
    %9 = arith.cmpi eq, %arg2, %c0_i32_8 : i32
    %10 = arith.extui %9 : i1 to i32
    %c0_i32_9 = arith.constant 0 : i32
    %11 = arith.cmpi ne, %10, %c0_i32_9 : i32
    scf.if %11 {
      %c0_10 = arith.constant 0 : index
      %c0_11 = arith.constant 0 : index
      %12 = vector.load %arg7[%c0_10, %c0_11] : memref<64x128xf32, #tpu.memory_space<vmem>>, vector<64x128xf32>
      %c0_12 = arith.constant 0 : index
      %c0_13 = arith.constant 0 : index
      %13 = vector.load %arg5[%c0_12, %c0_13] : memref<1x128xf32, #tpu.memory_space<vmem>>, vector<1x128xf32>
      %14 = vector.broadcast %13 : vector<1x128xf32> to vector<64x128xf32>
      %15 = arith.addf %12, %14 : vector<64x128xf32>
      %c0_14 = arith.constant 0 : index
      %c0_15 = arith.constant 0 : index
      %16 = vector.load %arg6[%c0_14, %c0_15] : memref<64x128xf32, #tpu.memory_space<vmem>>, vector<64x128xf32>
      tpu.vector_store %arg6[%c0_14, %c0_15], %15 {strides = array<i32>} : memref<64x128xf32, #tpu.memory_space<vmem>>, vector<64x128xf32>,
    } else {
    }
    return
  }
  func.func @transform_0(%arg0: i32, %arg1: i32, %arg2: i32) -> (i32, i32) {
    %c0_i32 = arith.constant 0 : i32
    return %arg0, %arg1 : i32, i32
  }
  func.func @transform_1(%arg0: i32, %arg1: i32, %arg2: i32) -> (i32, i32) {
    %c0_i32 = arith.constant 0 : i32
    %c0_i32_0 = arith.constant 0 : i32
    return %arg1, %c0_i32 : i32, i32
  }
  func.func @transform_2(%arg0: i32, %arg1: i32, %arg2: i32) -> (i32, i32) {
    %c0_i32 = arith.constant 0 : i32
    %c0_i32_0 = arith.constant 0 : i32
    return %c0_i32, %arg1 : i32, i32
  }
  func.func @transform_3(%arg0: i32, %arg1: i32, %arg2: i32) -> (i32, i32) {
    %c0_i32 = arith.constant 0 : i32
    return %arg0, %arg1 : i32, i32
  }
}

</mosaic_0001>

<llo_original>
// kernel: tpu_custom_call.1
$region0: #{tpu_custom_call.1}
  #allocation0 [shape = 'u32[]', space=smem, size = 0x4, offset = 0x4, fixed_abs, tag = 'smem constant byte address 0x4 - core index']
  #allocation1 [shape = 'u32[72,128]{1,0:T(1,128)}', space=vmem, size = 0x9000, scoped, tag = 'internal scratch']
  #allocation2 [shape = 'f32[64,128]{1,0:T(8,128)}', space=vmem, size = 0x8000, scoped, tag = 'scratch operand']
  %s0 = inlined_call_operand.hbm [shape: bf16[64,1152], index: 0, kind: input, shape index: {}]
  %s1 = inlined_call_operand.hbm [shape: bf16[1152,128], index: 1, kind: input, shape index: {}]
  %s2 = inlined_call_operand.vmem [shape: f32[1,128], index: 2, kind: input, shape index: {}]
  %s3 = inlined_call_operand.hbm [shape: f32[64,128], index: 3, kind: output, shape index: {}]
  %s4 = sld [smem:[#allocation0]]
  $region38: #{tpu_custom_call.1} parent=0
    _
  %s6 = ssub.s32 1, %s4
  %s7 = scalar_select 0, %s6, %s4
  $region1: #{tpu_custom_call.1} parent=0
    #allocation3 [shape = 'u8[147456]{0}', space=vmem, size = 0x24000, scoped, tag = 'input window, operand 0, single buffered']
    #allocation4 [shape = 's32[1]{0}', space=sflag, size = 0x4, scoped, tag = 'scoped memory for tpu_custom_call.1']
    #allocation5 [shape = 's32[1]{0}', space=sflag, size = 0x4, scoped, tag = 'scoped memory for tpu_custom_call.1']
    #allocation6 [shape = 'u8[294912]{0}', space=vmem, size = 0x48000, scoped, tag = 'input window, operand 1, single buffered']
    #allocation7 [shape = 's32[1]{0}', space=sflag, size = 0x4, scoped, tag = 'scoped memory for tpu_custom_call.1']
    #allocation8 [shape = 'u8[32768]{0}', space=vmem, size = 0x8000, scoped, tag = 'output window, operand 0, single buffered']
    %8 = vsyncpa [#allocation4], 0
    %9 = vsyncpa [#allocation7], 0
    %10 = vsyncpa [#allocation5], 0
    // Predicated region
    $region2: #{tpu_custom_call.1} parent=1 // pred_check
      _
    $region3: #{tpu_custom_call.1} parent=1 // pred_check_branch
      %12 = sbr.rel (0) target = $region5
    $region4: #{tpu_custom_call.1} parent=1 // pred_region
      %14 = vsyncadd [#allocation4], 0
      %s15 = sshll.u32 %s0, 4
      %s16 = int_to_ptr.hbm [resolvable:$true] %s15
      %s17 = sshll.u32 [#allocation3], 4
      %s18 = int_to_ptr.vmem [resolvable:$true] %s17
      %23 = dma.hbm_to_vmem [thread:$0]  %s16, 4608, %s18, [#allocation4], 576, 576, 36
    $region5: #{tpu_custom_call.1} parent=1 // pred_fallthru
      _
    // Predicated region
    $region6: #{tpu_custom_call.1} parent=1 // pred_check
      _
    $region7: #{tpu_custom_call.1} parent=1 // pred_check_branch
      %25 = sbr.rel (0) target = $region9
    $region8: #{tpu_custom_call.1} parent=1 // pred_region
      %27 = vsyncadd [#allocation7], 0
      %s28 = sshll.u32 %s1, 4
      %s29 = int_to_ptr.hbm [resolvable:$true] %s28
      %s30 = sshll.u32 [#allocation6], 4
      %s31 = int_to_ptr.vmem [resolvable:$true] %s30
      %36 = dma.hbm_to_vmem [thread:$0]  %s29, 9216, %s31, [#allocation7], 64, 64, 4
    $region9: #{tpu_custom_call.1} parent=1 // pred_fallthru
      _
    // Predicated region
    $region10: #{tpu_custom_call.1} parent=1 // pred_check
      _
    $region11: #{tpu_custom_call.1} parent=1 // pred_check_branch
      %38 = sbr.rel (0) target = $region13
    $region12: #{tpu_custom_call.1} parent=1 // pred_region
      _
    $region13: #{tpu_custom_call.1} parent=1 // pred_fallthru
      _
    // Predicated region
    $region14: #{tpu_custom_call.1} parent=1 // pred_check
      _
    $region15: #{tpu_custom_call.1} parent=1 // pred_check_branch
      %40 = sbr.rel (0) target = $region17
    $region16: #{tpu_custom_call.1} parent=1 // pred_region
      %42 = dma.done [#allocation4], 4608
    $region17: #{tpu_custom_call.1} parent=1 // pred_fallthru
      _
    // Predicated region
    $region18: #{tpu_custom_call.1} parent=1 // pred_check
      _
    $region19: #{tpu_custom_call.1} parent=1 // pred_check_branch
      %44 = sbr.rel (0) target = $region21
    $region20: #{tpu_custom_call.1} parent=1 // pred_region
      %46 = dma.done [#allocation7], 9216
    $region21: #{tpu_custom_call.1} parent=1 // pred_fallthru
      _
    %p47 = scmp.eq.s32.totalorder 0, 0
    // Predicated region
    $region22: #{tpu_custom_call.1} parent=1 // pred_check
      %p48 = pneg %p47
    $region23: #{tpu_custom_call.1} parent=1 // pred_check_branch
      %50 = sbr.rel (%p48) target = $region25
    $region24: #{tpu_custom_call.1} parent=1 // pred_region
      %51 = vst [vmem:[#allocation2] sm:$0xff] 0.0
      %52 = vst [vmem:[#allocation2 + $0x8] sm:$0xff] 0.0
      %53 = vst [vmem:[#allocation2 + $0x10] sm:$0xff] 0.0
      %54 = vst [vmem:[#allocation2 + $0x18] sm:$0xff] 0.0
      %55 = vst [vmem:[#allocation2 + $0x20] sm:$0xff] 0.0
      %56 = vst [vmem:[#allocation2 + $0x28] sm:$0xff] 0.0
      %57 = vst [vmem:[#allocation2 + $0x30] sm:$0xff] 0.0
      %58 = vst [vmem:[#allocation2 + $0x38] sm:$0xff] 0.0
    $region25: #{tpu_custom_call.1} parent=1 // pred_fallthru
      _
    %v59 = vld [vmem:[#allocation2] sm:$0xff]
    %v60 = vld [vmem:[#allocation2 + $0x8] sm:$0xff]
    %v61 = vld [vmem:[#allocation2 + $0x10] sm:$0xff]
    %v62 = vld [vmem:[#allocation2 + $0x18] sm:$0xff]
    %v63 = vld [vmem:[#allocation2 + $0x20] sm:$0xff]
    %v64 = vld [vmem:[#allocation2 + $0x28] sm:$0xff]
    %v65 = vld [vmem:[#allocation2 + $0x30] sm:$0xff]
    %v66 = vld [vmem:[#allocation2 + $0x38] sm:$0xff]
    %v67 = vld [vmem:[#allocation3] sm:$0xff]
    %v68 = vld [vmem:[#allocation3 + $0x8] sm:$0xff]
    %v69 = vld [vmem:[#allocation3 + $0x10] sm:$0xff]
    %v70 = vld [vmem:[#allocation3 + $0x18] sm:$0xff]
    %v71 = vld [vmem:[#allocation3 + $0x20] sm:$0xf]
    %v72 = vld [vmem:[#allocation3 + $0x24] sm:$0xff]
    %v73 = vld [vmem:[#allocation3 + $0x2c] sm:$0xff]
    %v74 = vld [vmem:[#allocation3 + $0x34] sm:$0xff]
    %v75 = vld [vmem:[#allocation3 + $0x3c] sm:$0xff]
    %v76 = vld [vmem:[#allocation3 + $0x44] sm:$0xf]
    %v77 = vld [vmem:[#allocation3 + $0x48] sm:$0xff]
    %v78 = vld [vmem:[#allocation3 + $0x50] sm:$0xff]
    %v79 = vld [vmem:[#allocation3 + $0x58] sm:$0xff]
    %v80 = vld [vmem:[#allocation3 + $0x60] sm:$0xff]
    %v81 = vld [vmem:[#allocation3 + $0x68] sm:$0xf]
    %v82 = vld [vmem:[#allocation3 + $0x6c] sm:$0xff]
    %v83 = vld [vmem:[#allocation3 + $0x74] sm:$0xff]
    %v84 = vld [vmem:[#allocation3 + $0x7c] sm:$0xff]
    %v85 = vld [vmem:[#allocation3 + $0x84] sm:$0xff]
    %v86 = vld [vmem:[#allocation3 + $0x8c] sm:$0xf]
    %v87 = vld [vmem:[#allocation3 + $0x90] sm:$0xff]
    %v88 = vld [vmem:[#allocation3 + $0x98] sm:$0xff]
    %v89 = vld [vmem:[#allocation3 + $0xa0] sm:$0xff]
    %v90 = vld [vmem:[#allocation3 + $0xa8] sm:$0xff]
    %v91 = vld [vmem:[#allocation3 + $0xb0] sm:$0xf]
    %v92 = vld [vmem:[#allocation3 + $0xb4] sm:$0xff]
    %v93 = vld [vmem:[#allocation3 + $0xbc] sm:$0xff]
    %v94 = vld [vmem:[#allocation3 + $0xc4] sm:$0xff]
    %v95 = vld [vmem:[#allocation3 + $0xcc] sm:$0xff]
    %v96 = vld [vmem:[#allocation3 + $0xd4] sm:$0xf]
    %v97 = vld [vmem:[#allocation3 + $0xd8] sm:$0xff]
    %v98 = vld [vmem:[#allocation3 + $0xe0] sm:$0xff]
    %v99 = vld [vmem:[#allocation3 + $0xe8] sm:$0xff]
    %v100 = vld [vmem:[#allocation3 + $0xf0] sm:$0xff]
    %v101 = vld [vmem:[#allocation3 + $0xf8] sm:$0xf]
    %v102 = vld [vmem:[#allocation3 + $0xfc] sm:$0xff]
    %v103 = vld [vmem:[#allocation3 + $0x104] sm:$0xff]
    %v104 = vld [vmem:[#allocation3 + $0x10c] sm:$0xff]
    %v105 = vld [vmem:[#allocation3 + $0x114] sm:$0xff]
    %v106 = vld [vmem:[#allocation3 + $0x11c] sm:$0xf]
    %v107 = vld [vmem:[#allocation6] sm:$0xf]
    %v108 = vld [vmem:[#allocation6 + $0x4] sm:$0xf]
    %v109 = vld [vmem:[#allocation6 + $0x8] sm:$0xf]
    %v110 = vld [vmem:[#allocation6 + $0xc] sm:$0xf]
    %v111 = vld [vmem:[#allocation6 + $0x10] sm:$0xf]
    %v112 = vld [vmem:[#allocation6 + $0x14] sm:$0xf]
    %v113 = vld [vmem:[#allocation6 + $0x18] sm:$0xf]
    %v114 = vld [vmem:[#allocation6 + $0x1c] sm:$0xf]
    %v115 = vld [vmem:[#allocation6 + $0x20] sm:$0xf]
    %v116 = vld [vmem:[#allocation6 + $0x24] sm:$0xf]
    %v117 = vld [vmem:[#allocation6 + $0x28] sm:$0xf]
    %v118 = vld [vmem:[#allocation6 + $0x2c] sm:$0xf]
    %v119 = vld [vmem:[#allocation6 + $0x30] sm:$0xf]
    %v120 = vld [vmem:[#allocation6 + $0x34] sm:$0xf]
    %v121 = vld [vmem:[#allocation6 + $0x38] sm:$0xf]
    %v122 = vld [vmem:[#allocation6 + $0x3c] sm:$0xf]
    %v123 = vld [vmem:[#allocation6 + $0x40] sm:$0xf]
    %v124 = vld [vmem:[#allocation6 + $0x44] sm:$0xf]
    %v125 = vld [vmem:[#allocation6 + $0x48] sm:$0xf]
    %v126 = vld [vmem:[#allocation6 + $0x4c] sm:$0xf]
    %v127 = vld [vmem:[#allocation6 + $0x50] sm:$0xf]
    %v128 = vld [vmem:[#allocation6 + $0x54] sm:$0xf]
    %v129 = vld [vmem:[#allocation6 + $0x58] sm:$0xf]
    %v130 = vld [vmem:[#allocation6 + $0x5c] sm:$0xf]
    %v131 = vld [vmem:[#allocation6 + $0x60] sm:$0xf]
    %v132 = vld [vmem:[#allocation6 + $0x64] sm:$0xf]
    %v133 = vld [vmem:[#allocation6 + $0x68] sm:$0xf]
    %v134 = vld [vmem:[#allocation6 + $0x6c] sm:$0xf]
    %v135 = vld [vmem:[#allocation6 + $0x70] sm:$0xf]
    %v136 = vld [vmem:[#allocation6 + $0x74] sm:$0xf]
    %v137 = vld [vmem:[#allocation6 + $0x78] sm:$0xf]
    %v138 = vld [vmem:[#allocation6 + $0x7c] sm:$0xf]
    %v139 = vld [vmem:[#allocation6 + $0x80] sm:$0xf]
    %v140 = vld [vmem:[#allocation6 + $0x84] sm:$0xf]
    %v141 = vld [vmem:[#allocation6 + $0x88] sm:$0xf]
    %v142 = vld [vmem:[#allocation6 + $0x8c] sm:$0xf]
    %v143 = vld [vmem:[#allocation6 + $0x90] sm:$0xf]
    %v144 = vld [vmem:[#allocation6 + $0x94] sm:$0xf]
    %v145 = vld [vmem:[#allocation6 + $0x98] sm:$0xf]
    %v146 = vld [vmem:[#allocation6 + $0x9c] sm:$0xf]
    %v147 = vld [vmem:[#allocation6 + $0xa0] sm:$0xf]
    %v148 = vld [vmem:[#allocation6 + $0xa4] sm:$0xf]
    %v149 = vld [vmem:[#allocation6 + $0xa8] sm:$0xf]
    %v150 = vld [vmem:[#allocation6 + $0xac] sm:$0xf]
    %v151 = vld [vmem:[#allocation6 + $0xb0] sm:$0xf]
    %v152 = vld [vmem:[#allocation6 + $0xb4] sm:$0xf]
    %v153 = vld [vmem:[#allocation6 + $0xb8] sm:$0xf]
    %v154 = vld [vmem:[#allocation6 + $0xbc] sm:$0xf]
    %v155 = vld [vmem:[#allocation6 + $0xc0] sm:$0xf]
    %v156 = vld [vmem:[#allocation6 + $0xc4] sm:$0xf]
    %v157 = vld [vmem:[#allocation6 + $0xc8] sm:$0xf]
    %v158 = vld [vmem:[#allocation6 + $0xcc] sm:$0xf]
    %v159 = vld [vmem:[#allocation6 + $0xd0] sm:$0xf]
    %v160 = vld [vmem:[#allocation6 + $0xd4] sm:$0xf]
    %v161 = vld [vmem:[#allocation6 + $0xd8] sm:$0xf]
    %v162 = vld [vmem:[#allocation6 + $0xdc] sm:$0xf]
    %v163 = vld [vmem:[#allocation6 + $0xe0] sm:$0xf]
    %v164 = vld [vmem:[#allocation6 + $0xe4] sm:$0xf]
    %v165 = vld [vmem:[#allocation6 + $0xe8] sm:$0xf]
    %v166 = vld [vmem:[#allocation6 + $0xec] sm:$0xf]
    %v167 = vld [vmem:[#allocation6 + $0xf0] sm:$0xf]
    %v168 = vld [vmem:[#allocation6 + $0xf4] sm:$0xf]
    %v169 = vld [vmem:[#allocation6 + $0xf8] sm:$0xf]
    %v170 = vld [vmem:[#allocation6 + $0xfc] sm:$0xf]
    %v171 = vld [vmem:[#allocation6 + $0x100] sm:$0xf]
    %v172 = vld [vmem:[#allocation6 + $0x104] sm:$0xf]
    %v173 = vld [vmem:[#allocation6 + $0x108] sm:$0xf]
    %v174 = vld [vmem:[#allocation6 + $0x10c] sm:$0xf]
    %v175 = vld [vmem:[#allocation6 + $0x110] sm:$0xf]
    %v176 = vld [vmem:[#allocation6 + $0x114] sm:$0xf]
    %v177 = vld [vmem:[#allocation6 + $0x118] sm:$0xf]
    %v178 = vld [vmem:[#allocation6 + $0x11c] sm:$0xf]
    %v179 = vld [vmem:[#allocation6 + $0x120] sm:$0xf]
    %v180 = vld [vmem:[#allocation6 + $0x124] sm:$0xf]
    %v181 = vld [vmem:[#allocation6 + $0x128] sm:$0xf]
    %v182 = vld [vmem:[#allocation6 + $0x12c] sm:$0xf]
    %v183 = vld [vmem:[#allocation6 + $0x130] sm:$0xf]
    %v184 = vld [vmem:[#allocation6 + $0x134] sm:$0xf]
    %v185 = vld [vmem:[#allocation6 + $0x138] sm:$0xf]
    %v186 = vld [vmem:[#allocation6 + $0x13c] sm:$0xf]
    %v187 = vld [vmem:[#allocation6 + $0x140] sm:$0xf]
    %v188 = vld [vmem:[#allocation6 + $0x144] sm:$0xf]
    %v189 = vld [vmem:[#allocation6 + $0x148] sm:$0xf]
    %v190 = vld [vmem:[#allocation6 + $0x14c] sm:$0xf]
    %v191 = vld [vmem:[#allocation6 + $0x150] sm:$0xf]
    %v192 = vld [vmem:[#allocation6 + $0x154] sm:$0xf]
    %v193 = vld [vmem:[#allocation6 + $0x158] sm:$0xf]
    %v194 = vld [vmem:[#allocation6 + $0x15c] sm:$0xf]
    %v195 = vld [vmem:[#allocation6 + $0x160] sm:$0xf]
    %v196 = vld [vmem:[#allocation6 + $0x164] sm:$0xf]
    %v197 = vld [vmem:[#allocation6 + $0x168] sm:$0xf]
    %v198 = vld [vmem:[#allocation6 + $0x16c] sm:$0xf]
    %v199 = vld [vmem:[#allocation6 + $0x170] sm:$0xf]
    %v200 = vld [vmem:[#allocation6 + $0x174] sm:$0xf]
    %v201 = vld [vmem:[#allocation6 + $0x178] sm:$0xf]
    %v202 = vld [vmem:[#allocation6 + $0x17c] sm:$0xf]
    %v203 = vld [vmem:[#allocation6 + $0x180] sm:$0xf]
    %v204 = vld [vmem:[#allocation6 + $0x184] sm:$0xf]
    %v205 = vld [vmem:[#allocation6 + $0x188] sm:$0xf]
    %v206 = vld [vmem:[#allocation6 + $0x18c] sm:$0xf]
    %v207 = vld [vmem:[#allocation6 + $0x190] sm:$0xf]
    %v208 = vld [vmem:[#allocation6 + $0x194] sm:$0xf]
    %v209 = vld [vmem:[#allocation6 + $0x198] sm:$0xf]
    %v210 = vld [vmem:[#allocation6 + $0x19c] sm:$0xf]
    %v211 = vld [vmem:[#allocation6 + $0x1a0] sm:$0xf]
    %v212 = vld [vmem:[#allocation6 + $0x1a4] sm:$0xf]
    %v213 = vld [vmem:[#allocation6 + $0x1a8] sm:$0xf]
    %v214 = vld [vmem:[#allocation6 + $0x1ac] sm:$0xf]
    %v215 = vld [vmem:[#allocation6 + $0x1b0] sm:$0xf]
    %v216 = vld [vmem:[#allocation6 + $0x1b4] sm:$0xf]
    %v217 = vld [vmem:[#allocation6 + $0x1b8] sm:$0xf]
    %v218 = vld [vmem:[#allocation6 + $0x1bc] sm:$0xf]
    %v219 = vld [vmem:[#allocation6 + $0x1c0] sm:$0xf]
    %v220 = vld [vmem:[#allocation6 + $0x1c4] sm:$0xf]
    %v221 = vld [vmem:[#allocation6 + $0x1c8] sm:$0xf]
    %v222 = vld [vmem:[#allocation6 + $0x1cc] sm:$0xf]
    %v223 = vld [vmem:[#allocation6 + $0x1d0] sm:$0xf]
    %v224 = vld [vmem:[#allocation6 + $0x1d4] sm:$0xf]
    %v225 = vld [vmem:[#allocation6 + $0x1d8] sm:$0xf]
    %v226 = vld [vmem:[#allocation6 + $0x1dc] sm:$0xf]
    %v227 = vld [vmem:[#allocation6 + $0x1e0] sm:$0xf]
    %v228 = vld [vmem:[#allocation6 + $0x1e4] sm:$0xf]
    %v229 = vld [vmem:[#allocation6 + $0x1e8] sm:$0xf]
    %v230 = vld [vmem:[#allocation6 + $0x1ec] sm:$0xf]
    %v231 = vld [vmem:[#allocation6 + $0x1f0] sm:$0xf]
    %v232 = vld [vmem:[#allocation6 + $0x1f4] sm:$0xf]
    %v233 = vld [vmem:[#allocation6 + $0x1f8] sm:$0xf]
    %v234 = vld [vmem:[#allocation6 + $0x1fc] sm:$0xf]
    %v235 = vld [vmem:[#allocation6 + $0x200] sm:$0xf]
    %v236 = vld [vmem:[#allocation6 + $0x204] sm:$0xf]
    %v237 = vld [vmem:[#allocation6 + $0x208] sm:$0xf]
    %v238 = vld [vmem:[#allocation6 + $0x20c] sm:$0xf]
    %v239 = vld [vmem:[#allocation6 + $0x210] sm:$0xf]
    %v240 = vld [vmem:[#allocation6 + $0x214] sm:$0xf]
    %v241 = vld [vmem:[#allocation6 + $0x218] sm:$0xf]
    %v242 = vld [vmem:[#allocation6 + $0x21c] sm:$0xf]
    %v243 = vld [vmem:[#allocation6 + $0x220] sm:$0xf]
    %v244 = vld [vmem:[#allocation6 + $0x224] sm:$0xf]
    %v245 = vld [vmem:[#allocation6 + $0x228] sm:$0xf]
    %v246 = vld [vmem:[#allocation6 + $0x22c] sm:$0xf]
    %v247 = vld [vmem:[#allocation6 + $0x230] sm:$0xf]
    %v248 = vld [vmem:[#allocation6 + $0x234] sm:$0xf]
    %v249 = vld [vmem:[#allocation6 + $0x238] sm:$0xf]
    %v250 = vld [vmem:[#allocation6 + $0x23c] sm:$0xf]
    %v291 = vunpack.c.l.b16 %v67
    %v292 = vunpack.c.h.b16 %v67
    %v293 = vunpack.c.l.b16 %v68
    %v294 = vunpack.c.h.b16 %v68
    %v295 = vunpack.c.l.b16 %v69
    %v296 = vunpack.c.h.b16 %v69
    %v297 = vunpack.c.l.b16 %v70
    %v298 = vunpack.c.h.b16 %v70
    %v299 = vunpack.c.l.b16 %v71
    %v300 = vunpack.c.l.b16 %v72
    %v301 = vunpack.c.h.b16 %v72
    %v302 = vunpack.c.l.b16 %v73
    %v303 = vunpack.c.h.b16 %v73
    %v304 = vunpack.c.l.b16 %v74
    %v305 = vunpack.c.h.b16 %v74
    %v306 = vunpack.c.l.b16 %v75
    %v307 = vunpack.c.h.b16 %v75
    %v308 = vunpack.c.l.b16 %v76
    %v309 = vunpack.c.l.b16 %v77
    %v310 = vunpack.c.h.b16 %v77
    %v311 = vunpack.c.l.b16 %v78
    %v312 = vunpack.c.h.b16 %v78
    %v313 = vunpack.c.l.b16 %v79
    %v314 = vunpack.c.h.b16 %v79
    %v315 = vunpack.c.l.b16 %v80
    %v316 = vunpack.c.h.b16 %v80
    %v317 = vunpack.c.l.b16 %v81
    %v318 = vunpack.c.l.b16 %v82
    %v319 = vunpack.c.h.b16 %v82
    %v320 = vunpack.c.l.b16 %v83
    %v321 = vunpack.c.h.b16 %v83
    %v322 = vunpack.c.l.b16 %v84
    %v323 = vunpack.c.h.b16 %v84
    %v324 = vunpack.c.l.b16 %v85
    %v325 = vunpack.c.h.b16 %v85
    %v326 = vunpack.c.l.b16 %v86
    %v327 = vunpack.c.l.b16 %v87
    %v328 = vunpack.c.h.b16 %v87
    %v329 = vunpack.c.l.b16 %v88
    %v330 = vunpack.c.h.b16 %v88
    %v331 = vunpack.c.l.b16 %v89
    %v332 = vunpack.c.h.b16 %v89
    %v333 = vunpack.c.l.b16 %v90
    %v334 = vunpack.c.h.b16 %v90
    %v335 = vunpack.c.l.b16 %v91
    %v336 = vunpack.c.l.b16 %v92
    %v337 = vunpack.c.h.b16 %v92
    %v338 = vunpack.c.l.b16 %v93
    %v339 = vunpack.c.h.b16 %v93
    %v340 = vunpack.c.l.b16 %v94
    %v341 = vunpack.c.h.b16 %v94
    %v342 = vunpack.c.l.b16 %v95
    %v343 = vunpack.c.h.b16 %v95
    %v344 = vunpack.c.l.b16 %v96
    %v345 = vunpack.c.l.b16 %v97
    %v346 = vunpack.c.h.b16 %v97
    %v347 = vunpack.c.l.b16 %v98
    %v348 = vunpack.c.h.b16 %v98
    %v349 = vunpack.c.l.b16 %v99
    %v350 = vunpack.c.h.b16 %v99
    %v351 = vunpack.c.l.b16 %v100
    %v352 = vunpack.c.h.b16 %v100
    %v353 = vunpack.c.l.b16 %v101
    %v354 = vunpack.c.l.b16 %v102
    %v355 = vunpack.c.h.b16 %v102
    %v356 = vunpack.c.l.b16 %v103
    %v357 = vunpack.c.h.b16 %v103
    %v358 = vunpack.c.l.b16 %v104
    %v359 = vunpack.c.h.b16 %v104
    %v360 = vunpack.c.l.b16 %v105
    %v361 = vunpack.c.h.b16 %v105
    %v362 = vunpack.c.l.b16 %v106
    %v363 = vpack.c.b16 %v300, %v291
    %v364 = vpack.c.b16 %v301, %v292
    %v365 = vpack.c.b16 %v302, %v293
    %v366 = vpack.c.b16 %v303, %v294
    %v367 = vpack.c.b16 %v304, %v295
    %v368 = vpack.c.b16 %v305, %v296
    %v369 = vpack.c.b16 %v306, %v297
    %v370 = vpack.c.b16 %v307, %v298
    %v371 = vpack.c.b16 %v308, %v299
    %v372 = vpack.c.b16 %v318, %v309
    %v373 = vpack.c.b16 %v319, %v310
    %v374 = vpack.c.b16 %v320, %v311
    %v375 = vpack.c.b16 %v321, %v312
    %v376 = vpack.c.b16 %v322, %v313
    %v377 = vpack.c.b16 %v323, %v314
    %v378 = vpack.c.b16 %v324, %v315
    %v379 = vpack.c.b16 %v325, %v316
    %v380 = vpack.c.b16 %v326, %v317
    %v381 = vpack.c.b16 %v336, %v327
    %v382 = vpack.c.b16 %v337, %v328
    %v383 = vpack.c.b16 %v338, %v329
    %v384 = vpack.c.b16 %v339, %v330
    %v385 = vpack.c.b16 %v340, %v331
    %v386 = vpack.c.b16 %v341, %v332
    %v387 = vpack.c.b16 %v342, %v333
    %v388 = vpack.c.b16 %v343, %v334
    %v389 = vpack.c.b16 %v344, %v335
    %v390 = vpack.c.b16 %v354, %v345
    %v391 = vpack.c.b16 %v355, %v346
    %v392 = vpack.c.b16 %v356, %v347
    %v393 = vpack.c.b16 %v357, %v348
    %v394 = vpack.c.b16 %v358, %v349
    %v395 = vpack.c.b16 %v359, %v350
    %v396 = vpack.c.b16 %v360, %v351
    %v397 = vpack.c.b16 %v361, %v352
    %v398 = vpack.c.b16 %v362, %v353
    %v579 = vunpack.c.l.b16 %v107
    %v580 = vunpack.c.l.b16 %v108
    %v581 = vunpack.c.l.b16 %v109
    %v582 = vunpack.c.l.b16 %v110
    %v583 = vunpack.c.l.b16 %v111
    %v584 = vunpack.c.l.b16 %v112
    %v585 = vunpack.c.l.b16 %v113
    %v586 = vunpack.c.l.b16 %v114
    %v587 = vunpack.c.l.b16 %v115
    %v588 = vunpack.c.l.b16 %v116
    %v589 = vunpack.c.l.b16 %v117
    %v590 = vunpack.c.l.b16 %v118
    %v591 = vunpack.c.l.b16 %v119
    %v592 = vunpack.c.l.b16 %v120
    %v593 = vunpack.c.l.b16 %v121
    %v594 = vunpack.c.l.b16 %v122
    %v595 = vunpack.c.l.b16 %v123
    %v596 = vunpack.c.l.b16 %v124
    %v597 = vunpack.c.l.b16 %v125
    %v598 = vunpack.c.l.b16 %v126
    %v599 = vunpack.c.l.b16 %v127
    %v600 = vunpack.c.l.b16 %v128
    %v601 = vunpack.c.l.b16 %v129
    %v602 = vunpack.c.l.b16 %v130
    %v603 = vunpack.c.l.b16 %v131
    %v604 = vunpack.c.l.b16 %v132
    %v605 = vunpack.c.l.b16 %v133
    %v606 = vunpack.c.l.b16 %v134
    %v607 = vunpack.c.l.b16 %v135
    %v608 = vunpack.c.l.b16 %v136
    %v609 = vunpack.c.l.b16 %v137
    %v610 = vunpack.c.l.b16 %v138
    %v611 = vunpack.c.l.b16 %v139
    %v612 = vunpack.c.l.b16 %v140
    %v613 = vunpack.c.l.b16 %v141
    %v614 = vunpack.c.l.b16 %v142
    %v615 = vunpack.c.l.b16 %v143
    %v616 = vunpack.c.l.b16 %v144
    %v617 = vunpack.c.l.b16 %v145
    %v618 = vunpack.c.l.b16 %v146
    %v619 = vunpack.c.l.b16 %v147
    %v620 = vunpack.c.l.b16 %v148
    %v621 = vunpack.c.l.b16 %v149
    %v622 = vunpack.c.l.b16 %v150
    %v623 = vunpack.c.l.b16 %v151
    %v624 = vunpack.c.l.b16 %v152
    %v625 = vunpack.c.l.b16 %v153
    %v626 = vunpack.c.l.b16 %v154
    %v627 = vunpack.c.l.b16 %v155
    %v628 = vunpack.c.l.b16 %v156
    %v629 = vunpack.c.l.b16 %v157
    %v630 = vunpack.c.l.b16 %v158
    %v631 = vunpack.c.l.b16 %v159
    %v632 = vunpack.c.l.b16 %v160
    %v633 = vunpack.c.l.b16 %v161
    %v634 = vunpack.c.l.b16 %v162
    %v635 = vunpack.c.l.b16 %v163
    %v636 = vunpack.c.l.b16 %v164
    %v637 = vunpack.c.l.b16 %v165
    %v638 = vunpack.c.l.b16 %v166
    %v639 = vunpack.c.l.b16 %v167
    %v640 = vunpack.c.l.b16 %v168
    %v641 = vunpack.c.l.b16 %v169
    %v642 = vunpack.c.l.b16 %v170
    %v643 = vunpack.c.l.b16 %v171
    %v644 = vunpack.c.l.b16 %v172
    %v645 = vunpack.c.l.b16 %v173
    %v646 = vunpack.c.l.b16 %v174
    %v647 = vunpack.c.l.b16 %v175
    %v648 = vunpack.c.l.b16 %v176
    %v649 = vunpack.c.l.b16 %v177
    %v650 = vunpack.c.l.b16 %v178
    %v651 = vunpack.c.l.b16 %v179
    %v652 = vunpack.c.l.b16 %v180
    %v653 = vunpack.c.l.b16 %v181
    %v654 = vunpack.c.l.b16 %v182
    %v655 = vunpack.c.l.b16 %v183
    %v656 = vunpack.c.l.b16 %v184
    %v657 = vunpack.c.l.b16 %v185
    %v658 = vunpack.c.l.b16 %v186
    %v659 = vunpack.c.l.b16 %v187
    %v660 = vunpack.c.l.b16 %v188
    %v661 = vunpack.c.l.b16 %v189
    %v662 = vunpack.c.l.b16 %v190
    %v663 = vunpack.c.l.b16 %v191
    %v664 = vunpack.c.l.b16 %v192
    %v665 = vunpack.c.l.b16 %v193
    %v666 = vunpack.c.l.b16 %v194
    %v667 = vunpack.c.l.b16 %v195
    %v668 = vunpack.c.l.b16 %v196
    %v669 = vunpack.c.l.b16 %v197
    %v670 = vunpack.c.l.b16 %v198
    %v671 = vunpack.c.l.b16 %v199
    %v672 = vunpack.c.l.b16 %v200
    %v673 = vunpack.c.l.b16 %v201
    %v674 = vunpack.c.l.b16 %v202
    %v675 = vunpack.c.l.b16 %v203
    %v676 = vunpack.c.l.b16 %v204
    %v677 = vunpack.c.l.b16 %v205
    %v678 = vunpack.c.l.b16 %v206
    %v679 = vunpack.c.l.b16 %v207
    %v680 = vunpack.c.l.b16 %v208
    %v681 = vunpack.c.l.b16 %v209
    %v682 = vunpack.c.l.b16 %v210
    %v683 = vunpack.c.l.b16 %v211
    %v684 = vunpack.c.l.b16 %v212
    %v685 = vunpack.c.l.b16 %v213
    %v686 = vunpack.c.l.b16 %v214
    %v687 = vunpack.c.l.b16 %v215
    %v688 = vunpack.c.l.b16 %v216
    %v689 = vunpack.c.l.b16 %v217
    %v690 = vunpack.c.l.b16 %v218
    %v691 = vunpack.c.l.b16 %v219
    %v692 = vunpack.c.l.b16 %v220
    %v693 = vunpack.c.l.b16 %v221
    %v694 = vunpack.c.l.b16 %v222
    %v695 = vunpack.c.l.b16 %v223
    %v696 = vunpack.c.l.b16 %v224
    %v697 = vunpack.c.l.b16 %v225
    %v698 = vunpack.c.l.b16 %v226
    %v699 = vunpack.c.l.b16 %v227
    %v700 = vunpack.c.l.b16 %v228
    %v701 = vunpack.c.l.b16 %v229
    %v702 = vunpack.c.l.b16 %v230
    %v703 = vunpack.c.l.b16 %v231
    %v704 = vunpack.c.l.b16 %v232
    %v705 = vunpack.c.l.b16 %v233
    %v706 = vunpack.c.l.b16 %v234
    %v707 = vunpack.c.l.b16 %v235
    %v708 = vunpack.c.l.b16 %v236
    %v709 = vunpack.c.l.b16 %v237
    %v710 = vunpack.c.l.b16 %v238
    %v711 = vunpack.c.l.b16 %v239
    %v712 = vunpack.c.l.b16 %v240
    %v713 = vunpack.c.l.b16 %v241
    %v714 = vunpack.c.l.b16 %v242
    %v715 = vunpack.c.l.b16 %v243
    %v716 = vunpack.c.l.b16 %v244
    %v717 = vunpack.c.l.b16 %v245
    %v718 = vunpack.c.l.b16 %v246
    %v719 = vunpack.c.l.b16 %v247
    %v720 = vunpack.c.l.b16 %v248
    %v721 = vunpack.c.l.b16 %v249
    %v722 = vunpack.c.l.b16 %v250
    %v723 = vpack.c.b16 %v580, %v579
    %v724 = vpack.c.b16 %v582, %v581
    %v725 = vpack.c.b16 %v584, %v583
    %v726 = vpack.c.b16 %v586, %v585
    %v727 = vpack.c.b16 %v588, %v587
    %v728 = vpack.c.b16 %v590, %v589
    %v729 = vpack.c.b16 %v592, %v591
    %v730 = vpack.c.b16 %v594, %v593
    %v731 = vpack.c.b16 %v596, %v595
    %v732 = vpack.c.b16 %v598, %v597
    %v733 = vpack.c.b16 %v600, %v599
    %v734 = vpack.c.b16 %v602, %v601
    %v735 = vpack.c.b16 %v604, %v603
    %v736 = vpack.c.b16 %v606, %v605
    %v737 = vpack.c.b16 %v608, %v607
    %v738 = vpack.c.b16 %v610, %v609
    %v739 = vpack.c.b16 %v612, %v611
    %v740 = vpack.c.b16 %v614, %v613
    %v741 = vpack.c.b16 %v616, %v615
    %v742 = vpack.c.b16 %v618, %v617
    %v743 = vpack.c.b16 %v620, %v619
    %v744 = vpack.c.b16 %v622, %v621
    %v745 = vpack.c.b16 %v624, %v623
    %v746 = vpack.c.b16 %v626, %v625
    %v747 = vpack.c.b16 %v628, %v627
    %v748 = vpack.c.b16 %v630, %v629
    %v749 = vpack.c.b16 %v632, %v631
    %v750 = vpack.c.b16 %v634, %v633
    %v751 = vpack.c.b16 %v636, %v635
    %v752 = vpack.c.b16 %v638, %v637
    %v753 = vpack.c.b16 %v640, %v639
    %v754 = vpack.c.b16 %v642, %v641
    %v755 = vpack.c.b16 %v644, %v643
    %v756 = vpack.c.b16 %v646, %v645
    %v757 = vpack.c.b16 %v648, %v647
    %v758 = vpack.c.b16 %v650, %v649
    %v759 = vpack.c.b16 %v652, %v651
    %v760 = vpack.c.b16 %v654, %v653
    %v761 = vpack.c.b16 %v656, %v655
    %v762 = vpack.c.b16 %v658, %v657
    %v763 = vpack.c.b16 %v660, %v659
    %v764 = vpack.c.b16 %v662, %v661
    %v765 = vpack.c.b16 %v664, %v663
    %v766 = vpack.c.b16 %v666, %v665
    %v767 = vpack.c.b16 %v668, %v667
    %v768 = vpack.c.b16 %v670, %v669
    %v769 = vpack.c.b16 %v672, %v671
    %v770 = vpack.c.b16 %v674, %v673
    %v771 = vpack.c.b16 %v676, %v675
    %v772 = vpack.c.b16 %v678, %v677
    %v773 = vpack.c.b16 %v680, %v679
    %v774 = vpack.c.b16 %v682, %v681
    %v775 = vpack.c.b16 %v684, %v683
    %v776 = vpack.c.b16 %v686, %v685
    %v777 = vpack.c.b16 %v688, %v687
    %v778 = vpack.c.b16 %v690, %v689
    %v779 = vpack.c.b16 %v692, %v691
    %v780 = vpack.c.b16 %v694, %v693
    %v781 = vpack.c.b16 %v696, %v695
    %v782 = vpack.c.b16 %v698, %v697
    %v783 = vpack.c.b16 %v700, %v699
    %v784 = vpack.c.b16 %v702, %v701
    %v785 = vpack.c.b16 %v704, %v703
    %v786 = vpack.c.b16 %v706, %v705
    %v787 = vpack.c.b16 %v708, %v707
    %v788 = vpack.c.b16 %v710, %v709
    %v789 = vpack.c.b16 %v712, %v711
    %v790 = vpack.c.b16 %v714, %v713
    %v791 = vpack.c.b16 %v716, %v715
    %v792 = vpack.c.b16 %v718, %v717
    %v793 = vpack.c.b16 %v720, %v719
    %v794 = vpack.c.b16 %v722, %v721
    %867 = vmatpush.bf16.msra.mxu0 %v730
    %868 = vmatpush.bf16.msra.mxu0 %v729
    %869 = vmatpush.bf16.msra.mxu0 %v728
    %870 = vmatpush.bf16.msra.mxu0 %v727
    %871 = vmatpush.bf16.msra.mxu0 %v726
    %872 = vmatpush.bf16.msra.mxu0 %v725
    %873 = vmatpush.bf16.msra.mxu0 %v724
    %874 = vmatpush.bf16.msra.mxu0 %v723
    %875 = vmatmul.bf16.gmra.mxu0 %v363
    %v876 = vpop.f32.mrf.mxu0
    %v877 = vadd.f32 0.0, %v876
    %v878 = vpop.f32.mrf.mxu0
    %v879 = vadd.f32 0.0, %v878
    %880 = vmatmul.bf16.gmra.mxu0 %v372
    %v881 = vpop.f32.mrf.mxu0
    %v882 = vadd.f32 0.0, %v881
    %v883 = vpop.f32.mrf.mxu0
    %v884 = vadd.f32 0.0, %v883
    %885 = vmatmul.bf16.gmra.mxu0 %v381
    %v886 = vpop.f32.mrf.mxu0
    %v887 = vadd.f32 0.0, %v886
    %v888 = vpop.f32.mrf.mxu0
    %v889 = vadd.f32 0.0, %v888
    %890 = vmatmul.bf16.gmra.mxu0 %v390
    %v891 = vpop.f32.mrf.mxu0
    %v892 = vadd.f32 0.0, %v891
    %v893 = vpop.f32.mrf.mxu0
    %v894 = vadd.f32 0.0, %v893
    %895 = vdwg.mxu0
    %896 = vmatpush.bf16.msra.mxu0 %v738
    %897 = vmatpush.bf16.msra.mxu0 %v737
    %898 = vmatpush.bf16.msra.mxu0 %v736
    %899 = vmatpush.bf16.msra.mxu0 %v735
    %900 = vmatpush.bf16.msra.mxu0 %v734
    %901 = vmatpush.bf16.msra.mxu0 %v733
    %902 = vmatpush.bf16.msra.mxu0 %v732
    %903 = vmatpush.bf16.msra.mxu0 %v731
    %904 = vmatmul.bf16.gmra.mxu0 %v364
    %v905 = vpop.f32.mrf.mxu0
    %v906 = vadd.f32 %v877, %v905
    %v907 = vpop.f32.mrf.mxu0
    %v908 = vadd.f32 %v879, %v907
    %909 = vmatmul.bf16.gmra.mxu0 %v373
    %v910 = vpop.f32.mrf.mxu0
    %v911 = vadd.f32 %v882, %v910
    %v912 = vpop.f32.mrf.mxu0
    %v913 = vadd.f32 %v884, %v912
    %914 = vmatmul.bf16.gmra.mxu0 %v382
    %v915 = vpop.f32.mrf.mxu0
    %v916 = vadd.f32 %v887, %v915
    %v917 = vpop.f32.mrf.mxu0
    %v918 = vadd.f32 %v889, %v917
    %919 = vmatmul.bf16.gmra.mxu0 %v391
    %v920 = vpop.f32.mrf.mxu0
    %v921 = vadd.f32 %v892, %v920
    %v922 = vpop.f32.mrf.mxu0
    %v923 = vadd.f32 %v894, %v922
    %924 = vdwg.mxu0
    %925 = vmatpush.bf16.msra.mxu0 %v746
    %926 = vmatpush.bf16.msra.mxu0 %v745
    %927 = vmatpush.bf16.msra.mxu0 %v744
    %928 = vmatpush.bf16.msra.mxu0 %v743
    %929 = vmatpush.bf16.msra.mxu0 %v742
    %930 = vmatpush.bf16.msra.mxu0 %v741
    %931 = vmatpush.bf16.msra.mxu0 %v740
    %932 = vmatpush.bf16.msra.mxu0 %v739
    %933 = vmatmul.bf16.gmra.mxu0 %v365
    %v934 = vpop.f32.mrf.mxu0
    %v935 = vadd.f32 %v906, %v934
    %v936 = vpop.f32.mrf.mxu0
    %v937 = vadd.f32 %v908, %v936
    %938 = vmatmul.bf16.gmra.mxu0 %v374
    %v939 = vpop.f32.mrf.mxu0
    %v940 = vadd.f32 %v911, %v939
    %v941 = vpop.f32.mrf.mxu0
    %v942 = vadd.f32 %v913, %v941
    %943 = vmatmul.bf16.gmra.mxu0 %v383
    %v944 = vpop.f32.mrf.mxu0
    %v945 = vadd.f32 %v916, %v944
    %v946 = vpop.f32.mrf.mxu0
    %v947 = vadd.f32 %v918, %v946
    %948 = vmatmul.bf16.gmra.mxu0 %v392
    %v949 = vpop.f32.mrf.mxu0
    %v950 = vadd.f32 %v921, %v949
    %v951 = vpop.f32.mrf.mxu0
    %v952 = vadd.f32 %v923, %v951
    %953 = vdwg.mxu0
    %954 = vmatpush.bf16.msra.mxu0 %v754
    %955 = vmatpush.bf16.msra.mxu0 %v753
    %956 = vmatpush.bf16.msra.mxu0 %v752
    %957 = vmatpush.bf16.msra.mxu0 %v751
    %958 = vmatpush.bf16.msra.mxu0 %v750
    %959 = vmatpush.bf16.msra.mxu0 %v749
    %960 = vmatpush.bf16.msra.mxu0 %v748
    %961 = vmatpush.bf16.msra.mxu0 %v747
    %962 = vmatmul.bf16.gmra.mxu0 %v366
    %v963 = vpop.f32.mrf.mxu0
    %v964 = vadd.f32 %v935, %v963
    %v965 = vpop.f32.mrf.mxu0
    %v966 = vadd.f32 %v937, %v965
    %967 = vmatmul.bf16.gmra.mxu0 %v375
    %v968 = vpop.f32.mrf.mxu0
    %v969 = vadd.f32 %v940, %v968
    %v970 = vpop.f32.mrf.mxu0
    %v971 = vadd.f32 %v942, %v970
    %972 = vmatmul.bf16.gmra.mxu0 %v384
    %v973 = vpop.f32.mrf.mxu0
    %v974 = vadd.f32 %v945, %v973
    %v975 = vpop.f32.mrf.mxu0
    %v976 = vadd.f32 %v947, %v975
    %977 = vmatmul.bf16.gmra.mxu0 %v393
    %v978 = vpop.f32.mrf.mxu0
    %v979 = vadd.f32 %v950, %v978
    %v980 = vpop.f32.mrf.mxu0
    %v981 = vadd.f32 %v952, %v980
    %982 = vdwg.mxu0
    %983 = vmatpush.bf16.msra.mxu0 %v762
    %984 = vmatpush.bf16.msra.mxu0 %v761
    %985 = vmatpush.bf16.msra.mxu0 %v760
    %986 = vmatpush.bf16.msra.mxu0 %v759
    %987 = vmatpush.bf16.msra.mxu0 %v758
    %988 = vmatpush.bf16.msra.mxu0 %v757
    %989 = vmatpush.bf16.msra.mxu0 %v756
    %990 = vmatpush.bf16.msra.mxu0 %v755
    %991 = vmatmul.bf16.gmra.mxu0 %v367
    %v992 = vpop.f32.mrf.mxu0
    %v993 = vadd.f32 %v964, %v992
    %v994 = vpop.f32.mrf.mxu0
    %v995 = vadd.f32 %v966, %v994
    %996 = vmatmul.bf16.gmra.mxu0 %v376
    %v997 = vpop.f32.mrf.mxu0
    %v998 = vadd.f32 %v969, %v997
    %v999 = vpop.f32.mrf.mxu0
    %v1000 = vadd.f32 %v971, %v999
    %1001 = vmatmul.bf16.gmra.mxu0 %v385
    %v1002 = vpop.f32.mrf.mxu0
    %v1003 = vadd.f32 %v974, %v1002
    %v1004 = vpop.f32.mrf.mxu0
    %v1005 = vadd.f32 %v976, %v1004
    %1006 = vmatmul.bf16.gmra.mxu0 %v394
    %v1007 = vpop.f32.mrf.mxu0
    %v1008 = vadd.f32 %v979, %v1007
    %v1009 = vpop.f32.mrf.mxu0
    %v1010 = vadd.f32 %v981, %v1009
    %1011 = vdwg.mxu0
    %1012 = vmatpush.bf16.msra.mxu0 %v770
    %1013 = vmatpush.bf16.msra.mxu0 %v769
    %1014 = vmatpush.bf16.msra.mxu0 %v768
    %1015 = vmatpush.bf16.msra.mxu0 %v767
    %1016 = vmatpush.bf16.msra.mxu0 %v766
    %1017 = vmatpush.bf16.msra.mxu0 %v765
    %1018 = vmatpush.bf16.msra.mxu0 %v764
    %1019 = vmatpush.bf16.msra.mxu0 %v763
    %1020 = vmatmul.bf16.gmra.mxu0 %v368
    %v1021 = vpop.f32.mrf.mxu0
    %v1022 = vadd.f32 %v993, %v1021
    %v1023 = vpop.f32.mrf.mxu0
    %v1024 = vadd.f32 %v995, %v1023
    %1025 = vmatmul.bf16.gmra.mxu0 %v377
    %v1026 = vpop.f32.mrf.mxu0
    %v1027 = vadd.f32 %v998, %v1026
    %v1028 = vpop.f32.mrf.mxu0
    %v1029 = vadd.f32 %v1000, %v1028
    %1030 = vmatmul.bf16.gmra.mxu0 %v386
    %v1031 = vpop.f32.mrf.mxu0
    %v1032 = vadd.f32 %v1003, %v1031
    %v1033 = vpop.f32.mrf.mxu0
    %v1034 = vadd.f32 %v1005, %v1033
    %1035 = vmatmul.bf16.gmra.mxu0 %v395
    %v1036 = vpop.f32.mrf.mxu0
    %v1037 = vadd.f32 %v1008, %v1036
    %v1038 = vpop.f32.mrf.mxu0
    %v1039 = vadd.f32 %v1010, %v1038
    %1040 = vdwg.mxu0
    %1041 = vmatpush.bf16.msra.mxu0 %v778
    %1042 = vmatpush.bf16.msra.mxu0 %v777
    %1043 = vmatpush.bf16.msra.mxu0 %v776
    %1044 = vmatpush.bf16.msra.mxu0 %v775
    %1045 = vmatpush.bf16.msra.mxu0 %v774
    %1046 = vmatpush.bf16.msra.mxu0 %v773
    %1047 = vmatpush.bf16.msra.mxu0 %v772
    %1048 = vmatpush.bf16.msra.mxu0 %v771
    %1049 = vmatmul.bf16.gmra.mxu0 %v369
    %v1050 = vpop.f32.mrf.mxu0
    %v1051 = vadd.f32 %v1022, %v1050
    %v1052 = vpop.f32.mrf.mxu0
    %v1053 = vadd.f32 %v1024, %v1052
    %1054 = vmatmul.bf16.gmra.mxu0 %v378
    %v1055 = vpop.f32.mrf.mxu0
    %v1056 = vadd.f32 %v1027, %v1055
    %v1057 = vpop.f32.mrf.mxu0
    %v1058 = vadd.f32 %v1029, %v1057
    %1059 = vmatmul.bf16.gmra.mxu0 %v387
    %v1060 = vpop.f32.mrf.mxu0
    %v1061 = vadd.f32 %v1032, %v1060
    %v1062 = vpop.f32.mrf.mxu0
    %v1063 = vadd.f32 %v1034, %v1062
    %1064 = vmatmul.bf16.gmra.mxu0 %v396
    %v1065 = vpop.f32.mrf.mxu0
    %v1066 = vadd.f32 %v1037, %v1065
    %v1067 = vpop.f32.mrf.mxu0
    %v1068 = vadd.f32 %v1039, %v1067
    %1069 = vdwg.mxu0
    %1070 = vmatpush.bf16.msra.mxu0 %v786
    %1071 = vmatpush.bf16.msra.mxu0 %v785
    %1072 = vmatpush.bf16.msra.mxu0 %v784
    %1073 = vmatpush.bf16.msra.mxu0 %v783
    %1074 = vmatpush.bf16.msra.mxu0 %v782
    %1075 = vmatpush.bf16.msra.mxu0 %v781
    %1076 = vmatpush.bf16.msra.mxu0 %v780
    %1077 = vmatpush.bf16.msra.mxu0 %v779
    %1078 = vmatmul.bf16.gmra.mxu0 %v370
    %v1079 = vpop.f32.mrf.mxu0
    %v1080 = vadd.f32 %v1051, %v1079
    %v1081 = vpop.f32.mrf.mxu0
    %v1082 = vadd.f32 %v1053, %v1081
    %1083 = vmatmul.bf16.gmra.mxu0 %v379
    %v1084 = vpop.f32.mrf.mxu0
    %v1085 = vadd.f32 %v1056, %v1084
    %v1086 = vpop.f32.mrf.mxu0
    %v1087 = vadd.f32 %v1058, %v1086
    %1088 = vmatmul.bf16.gmra.mxu0 %v388
    %v1089 = vpop.f32.mrf.mxu0
    %v1090 = vadd.f32 %v1061, %v1089
    %v1091 = vpop.f32.mrf.mxu0
    %v1092 = vadd.f32 %v1063, %v1091
    %1093 = vmatmul.bf16.gmra.mxu0 %v397
    %v1094 = vpop.f32.mrf.mxu0
    %v1095 = vadd.f32 %v1066, %v1094
    %v1096 = vpop.f32.mrf.mxu0
    %v1097 = vadd.f32 %v1068, %v1096
    %1098 = vdwg.mxu0
    %1099 = vmatpush.bf16.msra.mxu0 %v794
    %1100 = vmatpush.bf16.msra.mxu0 %v793
    %1101 = vmatpush.bf16.msra.mxu0 %v792
    %1102 = vmatpush.bf16.msra.mxu0 %v791
    %1103 = vmatpush.bf16.msra.mxu0 %v790
    %1104 = vmatpush.bf16.msra.mxu0 %v789
    %1105 = vmatpush.bf16.msra.mxu0 %v788
    %1106 = vmatpush.bf16.msra.mxu0 %v787
    %1107 = vmatmul.bf16.gmra.mxu0 %v371
    %v1108 = vpop.f32.mrf.mxu0
    %v1109 = vadd.f32 %v1080, %v1108
    %v1110 = vpop.f32.mrf.mxu0
    %v1111 = vadd.f32 %v1082, %v1110
    %1112 = vmatmul.bf16.gmra.mxu0 %v380
    %v1113 = vpop.f32.mrf.mxu0
    %v1114 = vadd.f32 %v1085, %v1113
    %v1115 = vpop.f32.mrf.mxu0
    %v1116 = vadd.f32 %v1087, %v1115
    %1117 = vmatmul.bf16.gmra.mxu0 %v389
    %v1118 = vpop.f32.mrf.mxu0
    %v1119 = vadd.f32 %v1090, %v1118
    %v1120 = vpop.f32.mrf.mxu0
    %v1121 = vadd.f32 %v1092, %v1120
    %1122 = vmatmul.bf16.gmra.mxu0 %v398
    %v1123 = vpop.f32.mrf.mxu0
    %v1124 = vadd.f32 %v1095, %v1123
    %v1125 = vpop.f32.mrf.mxu0
    %v1126 = vadd.f32 %v1097, %v1125
    %1127 = vdwg.mxu0
    %v1128 = vadd.f32 %v59, %v1109
    %v1129 = vadd.f32 %v60, %v1111
    %v1130 = vadd.f32 %v61, %v1114
    %v1131 = vadd.f32 %v62, %v1116
    %v1132 = vadd.f32 %v63, %v1119
    %v1133 = vadd.f32 %v64, %v1121
    %v1134 = vadd.f32 %v65, %v1124
    %v1135 = vadd.f32 %v66, %v1126
    %1136 = vst [vmem:[#allocation2] sm:$0xff] %v1128
    %1137 = vst [vmem:[#allocation2 + $0x8] sm:$0xff] %v1129
    %1138 = vst [vmem:[#allocation2 + $0x10] sm:$0xff] %v1130
    %1139 = vst [vmem:[#allocation2 + $0x18] sm:$0xff] %v1131
    %1140 = vst [vmem:[#allocation2 + $0x20] sm:$0xff] %v1132
    %1141 = vst [vmem:[#allocation2 + $0x28] sm:$0xff] %v1133
    %1142 = vst [vmem:[#allocation2 + $0x30] sm:$0xff] %v1134
    %1143 = vst [vmem:[#allocation2 + $0x38] sm:$0xff] %v1135
    // Predicated region
    $region26: #{tpu_custom_call.1} parent=1 // pred_check
      %p1144 = pneg %p47
    $region27: #{tpu_custom_call.1} parent=1 // pred_check_branch
      %1146 = sbr.rel (%p1144) target = $region29
    $region28: #{tpu_custom_call.1} parent=1 // pred_region
      %v1147 = vld [vmem:[#allocation2] sm:$0xff]
      %v1148 = vld [vmem:[#allocation2 + $0x8] sm:$0xff]
      %v1149 = vld [vmem:[#allocation2 + $0x10] sm:$0xff]
      %v1150 = vld [vmem:[#allocation2 + $0x18] sm:$0xff]
      %v1151 = vld [vmem:[#allocation2 + $0x20] sm:$0xff]
      %v1152 = vld [vmem:[#allocation2 + $0x28] sm:$0xff]
      %v1153 = vld [vmem:[#allocation2 + $0x30] sm:$0xff]
      %v1154 = vld [vmem:[#allocation2 + $0x38] sm:$0xff]
      %v1155 = vld [vmem:[%s2] sm:$0x1]
      %v1157 = vperm.slane %v1155, 0
      %v1159 = vadd.f32 %v1147, %v1157
      %v1160 = vadd.f32 %v1148, %v1157
      %v1161 = vadd.f32 %v1149, %v1157
      %v1162 = vadd.f32 %v1150, %v1157
      %v1163 = vadd.f32 %v1151, %v1157
      %v1164 = vadd.f32 %v1152, %v1157
      %v1165 = vadd.f32 %v1153, %v1157
      %v1166 = vadd.f32 %v1154, %v1157
      %1167 = vst [vmem:[#allocation8] sm:$0xff] %v1159
      %1168 = vst [vmem:[#allocation8 + $0x8] sm:$0xff] %v1160
      %1169 = vst [vmem:[#allocation8 + $0x10] sm:$0xff] %v1161
      %1170 = vst [vmem:[#allocation8 + $0x18] sm:$0xff] %v1162
      %1171 = vst [vmem:[#allocation8 + $0x20] sm:$0xff] %v1163
      %1172 = vst [vmem:[#allocation8 + $0x28] sm:$0xff] %v1164
      %1173 = vst [vmem:[#allocation8 + $0x30] sm:$0xff] %v1165
      %1174 = vst [vmem:[#allocation8 + $0x38] sm:$0xff] %v1166
    $region29: #{tpu_custom_call.1} parent=1 // pred_fallthru
      _
    // Predicated region
    $region30: #{tpu_custom_call.1} parent=1 // pred_check
      _
    $region31: #{tpu_custom_call.1} parent=1 // pred_check_branch
      %1176 = sbr.rel (0) target = $region33
    $region32: #{tpu_custom_call.1} parent=1 // pred_region
      %1178 = vsyncadd [#allocation5], 0
      %s1179 = sshll.u32 [#allocation8], 4
      %s1180 = int_to_ptr.vmem [resolvable:$true] %s1179
      %s1181 = sshll.u32 %s3, 4
      %s1182 = int_to_ptr.hbm [resolvable:$true] %s1181
      %1187 = dma.vmem_to_hbm [thread:$0]  %s1180, 1024, %s1182, [#allocation5], 128, 128, 8
    $region33: #{tpu_custom_call.1} parent=1 // pred_fallthru
      _
    // Predicated region
    $region34: #{tpu_custom_call.1} parent=1 // pred_check
      _
    $region35: #{tpu_custom_call.1} parent=1 // pred_check_branch
      %1189 = sbr.rel (0) target = $region37
    $region36: #{tpu_custom_call.1} parent=1 // pred_region
      %1191 = dma.done [#allocation5], 1024
    $region37: #{tpu_custom_call.1} parent=1 // pred_fallthru
      _
    %1192 = vsyncpa [#allocation4], 1
    %1193 = vsyncpa [#allocation7], 1
    %1194 = vsyncpa [#allocation5], 1

</llo_original>
